<compile_context>
chip_gen: v5e
topology: v5e:2x2
jax: 0.10.0
libtpu: 0.0.40
codegen_flags: <defaults>
</compile_context>

<pallas_src>
import functools
import math

import jax
import jax.numpy as jnp
from jax.experimental import pallas as pl
from jax.experimental.pallas import tpu as pltpu

_TM = 1024  # row tile for the 2-D slab kernels


def _vmem_limit_bytes():
    try:
        kind = jax.devices()[0].device_kind.lower()
    except Exception:
        return 48 * 1024 * 1024
    if "v5" in kind or "v6" in kind:
        return 96 * 1024 * 1024        # 128 MiB physical VMEM
    return 52 * 1024 * 1024            # v7x: 64 MiB / TensorCore, stay well under


_VMEM_LIMIT = _vmem_limit_bytes()


# ----------------------------- Pallas kernels -------------------------------

def _matmul_bn_silu_kernel(x_ref, w_ref, scale_ref, shift_ref, o_ref, acc_ref):
    # y = SiLU(BN(x @ w)); x/w in bf16, f32 accumulation; K tiled on grid axis 1.
    @pl.when(pl.program_id(1) == 0)
    def _init():
        acc_ref[...] = jnp.zeros_like(acc_ref)

    acc_ref[...] += jnp.dot(x_ref[...], w_ref[...],
                            preferred_element_type=jnp.float32)

    @pl.when(pl.program_id(1) == pl.num_programs(1) - 1)
    def _finalize():
        y = acc_ref[...] * scale_ref[...] + shift_ref[...]
        o_ref[...] = (y * jax.nn.sigmoid(y)).astype(o_ref.dtype)


def _conv3x3_s1_kernel(x_ref, w_ref, scale_ref, shift_ref, o_ref, acc_ref):
    # 3x3 stride-1 conv + BN + SiLU via in-VMEM shift-and-accumulate over the 9 taps.
    # x_ref: (1, H+2, W+2, tc) padded bf16 input chunk; w_ref: (3, 3, tc, Cout) bf16.
    @pl.when(pl.program_id(1) == 0)
    def _init():
        acc_ref[...] = jnp.zeros_like(acc_ref)

    H, W = o_ref.shape[1], o_ref.shape[2]
    for kh in range(3):
        for kw in range(3):
            patch = x_ref[0, kh:kh + H, kw:kw + W, :].reshape(H * W, -1)
            acc_ref[...] += jnp.dot(patch, w_ref[kh, kw],
                                    preferred_element_type=jnp.float32)

    @pl.when(pl.program_id(1) == pl.num_programs(1) - 1)
    def _finalize():
        y = acc_ref[...] * scale_ref[...] + shift_ref[...]
        y = y * jax.nn.sigmoid(y)
        o_ref[...] = y.reshape(1, H, W, -1).astype(o_ref.dtype)


def _repeat_rows(x, s):
    # nearest-neighbour repeat along the (major) row axis of a (rows, W, C) block.
    # broadcast + major-dim merge only -> layout-trivial in Mosaic.
    if s == 1:
        return x
    r, w, c = x.shape
    y = jnp.broadcast_to(x[:, None, :, :], (r, s, w, c))
    return y.reshape(r * s, w, c)


def _asff_fuse_kernel(l0_ref, l1_ref, l2_ref,
                      wv_w_ref, wv_s_ref, wv_b_ref,
                      wl_w_ref, wl_s_ref, wl_b_ref, o_ref, *, sub):
    # Fused: w_i = SiLU(BN(l_i @ Wv_i)); logits = SiLU(BN(sum_i w_i @ Wl_i));
    #        p = softmax(logits); out = sum_i l_i * p_i.
    # Level i arrives H-subsampled by sub[i]; its H-upsample happens here in VMEM.
    th, W, C = o_ref.shape
    rows = th * W
    cc = wv_w_ref.shape[2]

    def level_rows(ref, s, dtype):
        x = _repeat_rows(ref[...], s)                 # (th, W, C)
        return x.reshape(rows, C).astype(dtype)

    def weight_vec(ref, s, i):
        y = jnp.dot(level_rows(ref, s, jnp.bfloat16), wv_w_ref[i],
                    preferred_element_type=jnp.float32)
        y = y * wv_s_ref[i:i + 1, :] + wv_b_ref[i:i + 1, :]
        return (y * jax.nn.sigmoid(y)).astype(jnp.bfloat16)

    w0 = weight_vec(l0_ref, sub[0], 0)
    w1 = weight_vec(l1_ref, sub[1], 1)
    w2 = weight_vec(l2_ref, sub[2], 2)

    # equivalent to concat([w0, w1, w2], -1) @ Wl, with Wl row-sliced per level
    logits = (jnp.dot(w0, wl_w_ref[0:cc, :], preferred_element_type=jnp.float32)
              + jnp.dot(w1, wl_w_ref[cc:2 * cc, :], preferred_element_type=jnp.float32)
              + jnp.dot(w2, wl_w_ref[2 * cc:3 * cc, :], preferred_element_type=jnp.float32))
    logits = logits * wl_s_ref[...] + wl_b_ref[...]
    logits = logits * jax.nn.sigmoid(logits)          # SiLU

    # 3-way softmax as per-column VPU math (no cross-lane reduce on a 3/128 vreg)
    z0, z1, z2 = logits[:, 0:1], logits[:, 1:2], logits[:, 2:3]
    m = jnp.maximum(jnp.maximum(z0, z1), z2)
    e0, e1, e2 = jnp.exp(z0 - m), jnp.exp(z1 - m), jnp.exp(z2 - m)
    inv = 1.0 / (e0 + e1 + e2)

    out = level_rows(l0_ref, sub[0], jnp.float32) * (e0 * inv)
    out = out + level_rows(l1_ref, sub[1], jnp.float32) * (e1 * inv)
    out = out + level_rows(l2_ref, sub[2], jnp.float32) * (e2 * inv)
    o_ref[...] = out.reshape(th, W, C).astype(o_ref.dtype)


# ----------------------------- Pallas wrappers -------------------------------

def _pick_tk(k, target=512):
    if k <= target:
        return k
    for cand in (512, 256, 128):
        if k % cand == 0:
            return cand
    return 128                      # K gets zero-padded to a multiple of 128


def matmul_bn_silu(x2d, w2d, scale, shift, out_dtype=jnp.bfloat16):
    """x2d: (M, K)  w2d: (K, N) -> (M, N) = SiLU(BN(x @ w)); bf16 operands, f32 acc."""
    x2d = x2d.astype(jnp.bfloat16)
    w2d = w2d.astype(jnp.bfloat16)
    M, K = x2d.shape
    Nc = w2d.shape[1]
    tk = _pick_tk(K)
    if K % tk:                      # zero-pad K instead of a full-K block (v7x safety)
        kp = pl.cdiv(K, tk) * tk - K
        x2d = jnp.pad(x2d, ((0, 0), (0, kp)))
        w2d = jnp.pad(w2d, ((0, kp), (0, 0)))
        K += kp
    tm = min(M, _TM)
    grid = (pl.cdiv(M, tm), K // tk)
    return pl.pallas_call(
        _matmul_bn_silu_kernel,
        out_shape=jax.ShapeDtypeStruct((M, Nc), out_dtype),
        grid=grid,
        in_specs=[pl.BlockSpec((tm, tk), lambda i, k: (i, k)),
                  pl.BlockSpec((tk, Nc), lambda i, k: (k, 0)),
                  pl.BlockSpec((1, Nc), lambda i, k: (0, 0)),
                  pl.BlockSpec((1, Nc), lambda i, k: (0, 0))],
        out_specs=pl.BlockSpec((tm, Nc), lambda i, k: (i, 0)),
        scratch_shapes=[pltpu.VMEM((tm, Nc), jnp.float32)],
        compiler_params=pltpu.CompilerParams(
            dimension_semantics=("parallel", "arbitrary"),
            vmem_limit_bytes=_VMEM_LIMIT),
    )(x2d, w2d, scale.reshape(1, Nc).astype(jnp.float32),
      shift.reshape(1, Nc).astype(jnp.float32))


def conv3x3_bn_silu_s1(x, p, out_dtype=jnp.bfloat16):
    """3x3 stride-1 conv + BN + SiLU, shift-and-accumulate in VMEM (no im2col slab)."""
    w, scale, shift = p
    N, H, W, Cin = x.shape
    Cout = w.shape[-1]
    xp = jnp.pad(x.astype(jnp.bfloat16), ((0, 0), (1, 1), (1, 1), (0, 0)))
    wb = w.astype(jnp.bfloat16)
    tc = _pick_tk(Cin)
    if Cin % tc:
        cp = pl.cdiv(Cin, tc) * tc - Cin
        xp = jnp.pad(xp, ((0, 0), (0, 0), (0, 0), (0, cp)))
        wb = jnp.pad(wb, ((0, 0), (0, 0), (0, cp), (0, 0)))
        Cin += cp
    grid = (N, Cin // tc)
    return pl.pallas_call(
        _conv3x3_s1_kernel,
        out_shape=jax.ShapeDtypeStruct((N, H, W, Cout), out_dtype),
        grid=grid,
        in_specs=[pl.BlockSpec((1, H + 2, W + 2, tc), lambda n, k: (n, 0, 0, k)),
                  pl.BlockSpec((3, 3, tc, Cout), lambda n, k: (0, 0, k, 0)),
                  pl.BlockSpec((1, Cout), lambda n, k: (0, 0)),
                  pl.BlockSpec((1, Cout), lambda n, k: (0, 0))],
        out_specs=pl.BlockSpec((1, H, W, Cout), lambda n, k: (n, 0, 0, 0)),
        scratch_shapes=[pltpu.VMEM((H * W, Cout), jnp.float32)],
        compiler_params=pltpu.CompilerParams(
            dimension_semantics=("parallel", "arbitrary"),
            vmem_limit_bytes=_VMEM_LIMIT),
    )(xp, wb, scale.reshape(1, Cout).astype(jnp.float32),
      shift.reshape(1, Cout).astype(jnp.float32))


def asff_fuse(l0, l1, l2, sub, wv_w, wv_s, wv_b, wl_w, wl_scale, wl_shift,
              out_dtype=jnp.bfloat16):
    """l_i: (N*H//sub[i], W, C) rows (W already matches the output); H-upsample fused."""
    s0, s1, s2 = sub
    NH, W, C = (l0, l1, l2)[sub.index(1)].shape
    cc = wv_w.shape[2]
    base = max(sub)
    row_bytes = W * C * 2
    th = NH
    while th % (2 * base) == 0 and th * row_bytes > (1 << 20):
        th //= 2
    grid = (NH // th,)
    kernel = functools.partial(_asff_fuse_kernel, sub=sub)
    return pl.pallas_call(
        kernel,
        out_shape=jax.ShapeDtypeStruct((NH, W, C), out_dtype),
        grid=grid,
        in_specs=[pl.BlockSpec((th // s0, W, C), lambda r: (r, 0, 0)),
                  pl.BlockSpec((th // s1, W, C), lambda r: (r, 0, 0)),
                  pl.BlockSpec((th // s2, W, C), lambda r: (r, 0, 0)),
                  pl.BlockSpec((3, C, cc), lambda r: (0, 0, 0)),
                  pl.BlockSpec((3, cc), lambda r: (0, 0)),
                  pl.BlockSpec((3, cc), lambda r: (0, 0)),
                  pl.BlockSpec((3 * cc, 3), lambda r: (0, 0)),
                  pl.BlockSpec((1, 3), lambda r: (0, 0)),
                  pl.BlockSpec((1, 3), lambda r: (0, 0))],
        out_specs=pl.BlockSpec((th, W, C), lambda r: (r, 0, 0)),
        compiler_params=pltpu.CompilerParams(
            dimension_semantics=("parallel",),
            vmem_limit_bytes=_VMEM_LIMIT),
    )(l0, l1, l2,
      wv_w.astype(jnp.bfloat16), wv_s.astype(jnp.float32), wv_b.astype(jnp.float32),
      wl_w.astype(jnp.bfloat16),
      wl_scale.reshape(1, 3).astype(jnp.float32),
      wl_shift.reshape(1, 3).astype(jnp.float32))


# ----------------------------- JAX glue --------------------------------------

def im2col(x, k, stride, pad):
    """NHWC -> (N*Ho*Wo, k*k*C) with (kh, kw, c) flattening (matches HWIO reshape)."""
    # TODO(synk): only used by the stride-2 convs now; replace with a space-to-depth /
    #             halo-DMA lowering to kill the remaining slab traffic.
    N, H, W, C = x.shape
    xp = jnp.pad(x, ((0, 0), (pad, pad), (pad, pad), (0, 0)))
    Ho = (H + 2 * pad - k) // stride + 1
    Wo = (W + 2 * pad - k) // stride + 1
    cols = []
    for kh in range(k):
        for kw in range(k):
            cols.append(xp[:, kh:kh + stride * (Ho - 1) + 1:stride,
                           kw:kw + stride * (Wo - 1) + 1:stride, :])
    patches = jnp.stack(cols, axis=3)                 # (N, Ho, Wo, k*k, C)
    return patches.reshape(N * Ho * Wo, k * k * C), (Ho, Wo)


def conv_bn_silu(x, p, stride=1, out_dtype=jnp.bfloat16):
    """Conv(k, stride, pad=k//2, bias=False) + BN(eval) + SiLU via Pallas kernels."""
    w, scale, shift = p
    k = w.shape[0]
    N, H, W, Cin = x.shape
    Cout = w.shape[-1]
    if k == 3 and stride == 1:
        return conv3x3_bn_silu_s1(x, p, out_dtype)
    if k == 1 and stride == 1:
        x2d, out_hw = x.reshape(-1, Cin), (H, W)
    else:
        x2d, out_hw = im2col(x.astype(jnp.bfloat16), k, stride, k // 2)
    y = matmul_bn_silu(x2d, w.reshape(-1, Cout), scale, shift, out_dtype)
    return y.reshape(N, out_hw[0], out_hw[1], Cout)


def max_pool_3x3_s2_p1(x):
    return jax.lax.reduce_window(x, -jnp.inf, jax.lax.max,
                                 (1, 3, 3, 1), (1, 2, 2, 1),
                                 ((0, 0), (1, 1), (1, 1), (0, 0)))


def upsample_nearest(x, s):
    return jnp.repeat(jnp.repeat(x, s, axis=1), s, axis=2)


# ----------------------------- parameters ------------------------------------

def init_conv_params(key, k, cin, cout):
    k1, k2, k3, k4, k5 = jax.random.split(key, 5)
    w = jax.random.normal(k1, (k, k, cin, cout), jnp.float32) / math.sqrt(k * k * cin)
    gamma = 1.0 + 0.1 * jax.random.normal(k2, (cout,), jnp.float32)
    beta = 0.1 * jax.random.normal(k3, (cout,), jnp.float32)
    mean = 0.1 * jax.random.normal(k4, (cout,), jnp.float32)
    var = 1.0 + 0.5 * jax.random.uniform(k5, (cout,), jnp.float32)
    scale = gamma / jnp.sqrt(var + 1e-5)              # BN eval-mode folded
    shift = beta - mean * scale
    return (w, scale, shift)


def init_params(key, level, ch, multiplier=1.0, rfb=False):
    dim = [int(ch[2] * multiplier), int(ch[1] * multiplier), int(ch[0] * multiplier)]
    inter_dim = dim[level]
    compress_c = 8 if rfb else 16
    keys = iter(jax.random.split(key, 16))
    p = {}
    if level == 0:
        p['stride_level_1'] = init_conv_params(next(keys), 3, int(ch[1] * multiplier), inter_dim)
        p['stride_level_2'] = init_conv_params(next(keys), 3, int(ch[0] * multiplier), inter_dim)
        p['expand'] = init_conv_params(next(keys), 3, inter_dim, int(ch[2] * multiplier))
    elif level == 1:
        p['compress_level_0'] = init_conv_params(next(keys), 1, int(ch[2] * multiplier), inter_dim)
        p['stride_level_2'] = init_conv_params(next(keys), 3, int(ch[0] * multiplier), inter_dim)
        p['expand'] = init_conv_params(next(keys), 3, inter_dim, int(ch[1] * multiplier))
    else:
        p['compress_level_0'] = init_conv_params(next(keys), 1, int(ch[2] * multiplier), inter_dim)
        p['compress_level_1'] = init_conv_params(next(keys), 1, int(ch[1] * multiplier), inter_dim)
        p['expand'] = init_conv_params(next(keys), 3, inter_dim, int(ch[0] * multiplier))
    p['weight_level_0'] = init_conv_params(next(keys), 1, inter_dim, compress_c)
    p['weight_level_1'] = init_conv_params(next(keys), 1, inter_dim, compress_c)
    p['weight_level_2'] = init_conv_params(next(keys), 1, inter_dim, compress_c)
    p['weight_levels'] = init_conv_params(next(keys), 1, compress_c * 3, 3)
    return p


def _stacked_weight_level_params(params):
    entries = [params['weight_level_0'], params['weight_level_1'], params['weight_level_2']]
    wv_w = jnp.stack([w.reshape(w.shape[2], w.shape[3]) for (w, _, _) in entries])  # (3, C, cc)
    wv_s = jnp.stack([s for (_, s, _) in entries])                                  # (3, cc)
    wv_b = jnp.stack([b for (_, _, b) in entries])                                  # (3, cc)
    return wv_w, wv_s, wv_b


# ----------------------------- ASFFV5 forward (Pallas) ------------------------

def asff_forward(level, params, x):
    x_level_0, x_level_1, x_level_2 = x[2], x[1], x[0]
    if level == 0:
        l0, s0 = x_level_0, 1
        l1, s1 = conv_bn_silu(x_level_1, params['stride_level_1'], 2), 1
        l2, s2 = conv_bn_silu(max_pool_3x3_s2_p1(x_level_2),
                              params['stride_level_2'], 2), 1
    elif level == 1:
        c0 = conv_bn_silu(x_level_0, params['compress_level_0'], 1)
        l0, s0 = jnp.repeat(c0, 2, axis=2), 2          # W repeat here; H fold in kernel
        l1, s1 = x_level_1, 1
        l2, s2 = conv_bn_silu(x_level_2, params['stride_level_2'], 2), 1
    else:
        c0 = conv_bn_silu(x_level_0, params['compress_level_0'], 1)
        l0, s0 = jnp.repeat(c0, 4, axis=2), 4
        c1 = conv_bn_silu(x_level_1, params['compress_level_1'], 1)
        l1, s1 = jnp.repeat(c1, 2, axis=2), 2
        l2, s2 = x_level_2, 1

    full = (l0, l1, l2)[level]                         # the pass-through level
    N, H, W, C = full.shape
    wv_w, wv_s, wv_b = _stacked_weight_level_params(params)
    wl_w, wl_scale, wl_shift = params['weight_levels']
    fused = asff_fuse(l0.reshape(N * H // s0, W, C),
                      l1.reshape(N * H // s1, W, C),
                      l2.reshape(N * H // s2, W, C),
                      (s0, s1, s2),
                      wv_w, wv_s, wv_b,
                      wl_w.reshape(-1, 3), wl_scale, wl_shift).reshape(N, H, W, C)
    return conv_bn_silu(fused, params['expand'], 1, out_dtype=jnp.float32)


# ----------------------------- pure-JAX reference ------------------------------

def ref_conv_bn_silu(x, p, stride=1, out_dtype=jnp.bfloat16):
    # mirrors the Pallas precision policy: bf16 operands, f32 accumulation/BN/SiLU.
    w, scale, shift = p
    k = w.shape[0]
    pad = k // 2
    y = jax.lax.conv_general_dilated(
        x.astype(jnp.bfloat16), w.astype(jnp.bfloat16), (stride, stride),
        ((pad, pad), (pad, pad)),
        dimension_numbers=('NHWC', 'HWIO', 'NHWC'),
        preferred_element_type=jnp.float32,
        precision=jax.lax.Precision.HIGHEST)
    y = y * scale + shift
    return (y * jax.nn.sigmoid(y)).astype(out_dtype)


def asff_forward_ref(level, params, x):
    x_level_0, x_level_1, x_level_2 = x[2], x[1], x[0]
    if level == 0:
        l0 = x_level_0
        l1 = ref_conv_bn_silu(x_level_1, params['stride_level_1'], 2)
        l2 = ref_conv_bn_silu(max_pool_3x3_s2_p1(x_level_2), params['stride_level_2'], 2)
    elif level == 1:
        l0 = upsample_nearest(ref_conv_bn_silu(x_level_0, params['compress_level_0'], 1), 2)
        l1 = x_level_1
        l2 = ref_conv_bn_silu(x_level_2, params['stride_level_2'], 2)
    else:
        l0 = upsample_nearest(ref_conv_bn_silu(x_level_0, params['compress_level_0'], 1), 4)
        l1 = upsample_nearest(ref_conv_bn_silu(x_level_1, params['compress_level_1'], 1), 2)
        l2 = x_level_2
    w0 = ref_conv_bn_silu(l0, params['weight_level_0'], 1, out_dtype=jnp.float32)
    w1 = ref_conv_bn_silu(l1, params['weight_level_1'], 1, out_dtype=jnp.float32)
    w2 = ref_conv_bn_silu(l2, params['weight_level_2'], 1, out_dtype=jnp.float32)
    logits = ref_conv_bn_silu(jnp.concatenate([w0, w1, w2], axis=-1),
                              params['weight_levels'], 1, out_dtype=jnp.float32)
    p = jax.nn.softmax(logits, axis=-1)
    fused = (l0.astype(jnp.float32) * p[..., 0:1]
             + l1.astype(jnp.float32) * p[..., 1:2]
             + l2.astype(jnp.float32) * p[..., 2:3]).astype(jnp.bfloat16)
    return ref_conv_bn_silu(fused, params['expand'], 1, out_dtype=jnp.float32)


# ----------------------------- main -------------------------------------------

if __name__ == "__main__":
    key = jax.random.PRNGKey(0)
    k_in, k_par = jax.random.split(key)

    ch = (16, 32, 64)          # (small, medium, large) channels
    level = 1
    N, H0, W0 = 2, 4, 4        # spatial size of the level-0 (smallest) feature map

    k0, k1, k2 = jax.random.split(k_in, 3)
    x_level_2 = jax.random.normal(k0, (N, 4 * H0, 4 * W0, ch[0]), jnp.float32)  # x[0]
    x_level_1 = jax.random.normal(k1, (N, 2 * H0, 2 * W0, ch[1]), jnp.float32)  # x[1]
    x_level_0 = jax.random.normal(k2, (N, H0, W0, ch[2]), jnp.float32)          # x[2]
    x = [x_level_2, x_level_1, x_level_0]

    params = init_params(k_par, level, ch)

    out = jax.block_until_ready(asff_forward(level, params, x))
    ref = jax.block_until_ready(asff_forward_ref(level, params, x))

    assert out.shape == (N, 2 * H0, 2 * W0, ch[1]), out.shape
    err = float(jnp.max(jnp.abs(out - ref)))
    if not bool(jnp.allclose(out, ref, atol=3e-2, rtol=3e-2)):
        raise AssertionError(f"Pallas vs reference mismatch, max abs err = {err}")
    print("KERNEL_OK")
</pallas_src>

<mosaic_0001>
module attributes {stable_mosaic.version = 11 : i64} {
  func.func @_matmul_bn_silu_kernel(%arg0: i32, %arg1: i32, %arg2: memref<32x64xbf16, #tpu.memory_space<vmem>>, %arg3: memref<64x32xbf16, #tpu.memory_space<vmem>>, %arg4: memref<1x32xf32, #tpu.memory_space<vmem>>, %arg5: memref<1x32xf32, #tpu.memory_space<vmem>>, %arg6: memref<32x32xbf16, #tpu.memory_space<vmem>>, %arg7: memref<32x32xf32, #tpu.memory_space<vmem>>) attributes {dimension_semantics = [#tpu.dimension_semantics<parallel>, #tpu.dimension_semantics<arbitrary>], iteration_bounds = array<i64: 1, 1>, scalar_prefetch = 0 : i64, scratch_operands = 1 : i64, tpu.core_type = #tpu.core_type<tc>, window_params = [{transform_indices = @transform_0, window_bounds = array<i64: 32, 64>}, {transform_indices = @transform_1, window_bounds = array<i64: 64, 32>}, {pipeline_mode = #tpu.pipeline_mode<synchronous>, transform_indices = @transform_2, window_bounds = array<i64: 1, 32>}, {pipeline_mode = #tpu.pipeline_mode<synchronous>, transform_indices = @transform_3, window_bounds = array<i64: 1, 32>}, {transform_indices = @transform_4, window_bounds = array<i64: 32, 32>}]} {
    %c0_i32 = arith.constant 0 : i32
    %0 = arith.cmpi eq, %arg1, %c0_i32 : i32
    %1 = arith.extui %0 : i1 to i32
    %c0_i32_0 = arith.constant 0 : i32
    %2 = arith.cmpi ne, %1, %c0_i32_0 : i32
    scf.if %2 {
      %cst_10 = arith.constant 0.000000e+00 : f32
      %12 = vector.broadcast %cst_10 : f32 to vector<32x32xf32>
      %c0_11 = arith.constant 0 : index
      %c0_12 = arith.constant 0 : index
      %13 = vector.load %arg7[%c0_11, %c0_12] : memref<32x32xf32, #tpu.memory_space<vmem>>, vector<32x32xf32>
      tpu.vector_store %arg7[%c0_11, %c0_12], %12 {strides = array<i32>} : memref<32x32xf32, #tpu.memory_space<vmem>>, vector<32x32xf32>,
    } else {
    }
    %c0 = arith.constant 0 : index
    %c0_1 = arith.constant 0 : index
    %3 = vector.load %arg7[%c0, %c0_1] : memref<32x32xf32, #tpu.memory_space<vmem>>, vector<32x32xf32>
    %c0_2 = arith.constant 0 : index
    %c0_3 = arith.constant 0 : index
    %4 = vector.load %arg2[%c0_2, %c0_3] : memref<32x64xbf16, #tpu.memory_space<vmem>>, vector<32x64xbf16>
    %c0_4 = arith.constant 0 : index
    %c0_5 = arith.constant 0 : index
    %5 = vector.load %arg3[%c0_4, %c0_5] : memref<64x32xbf16, #tpu.memory_space<vmem>>, vector<64x32xbf16>
    %cst = arith.constant dense<0.000000e+00> : vector<32x32xf32>
    %6 = tpu.matmul %4, %5, %cst {dimension_numbers = #tpu.dot_dimension_numbers<[1], [0], [0], [1], [0, 0, 1, 1], [], []>} : vector<32x64xbf16>, vector<64x32xbf16>, vector<32x32xf32> -> vector<32x32xf32>
    %7 = arith.addf %3, %6 : vector<32x32xf32>
    %c0_6 = arith.constant 0 : index
    %c0_7 = arith.constant 0 : index
    %8 = vector.load %arg7[%c0_6, %c0_7] : memref<32x32xf32, #tpu.memory_space<vmem>>, vector<32x32xf32>
    tpu.vector_store %arg7[%c0_6, %c0_7], %7 {strides = array<i32>} : memref<32x32xf32, #tpu.memory_space<vmem>>, vector<32x32xf32>,
    %c0_i32_8 = arith.constant 0 : i32
    %9 = arith.cmpi eq, %arg1, %c0_i32_8 : i32
    %10 = arith.extui %9 : i1 to i32
    %c0_i32_9 = arith.constant 0 : i32
    %11 = arith.cmpi ne, %10, %c0_i32_9 : i32
    scf.if %11 {
      %c0_10 = arith.constant 0 : index
      %c0_11 = arith.constant 0 : index
      %12 = vector.load %arg7[%c0_10, %c0_11] : memref<32x32xf32, #tpu.memory_space<vmem>>, vector<32x32xf32>
      %c0_12 = arith.constant 0 : index
      %c0_13 = arith.constant 0 : index
      %13 = vector.load %arg4[%c0_12, %c0_13] : memref<1x32xf32, #tpu.memory_space<vmem>>, vector<1x32xf32>
      %14 = vector.broadcast %13 : vector<1x32xf32> to vector<32x32xf32>
      %15 = arith.mulf %12, %14 : vector<32x32xf32>
      %c0_14 = arith.constant 0 : index
      %c0_15 = arith.constant 0 : index
      %16 = vector.load %arg5[%c0_14, %c0_15] : memref<1x32xf32, #tpu.memory_space<vmem>>, vector<1x32xf32>
      %17 = vector.broadcast %16 : vector<1x32xf32> to vector<32x32xf32>
      %18 = arith.addf %15, %17 : vector<32x32xf32>
      %19 = arith.negf %18 : vector<32x32xf32>
      %20 = math.exp %19 : vector<32x32xf32>
      %cst_16 = arith.constant 1.000000e+00 : f32
      %21 = vector.broadcast %cst_16 : f32 to vector<32x32xf32>
      %22 = arith.addf %21, %20 : vector<32x32xf32>
      %23 = arith.divf %21, %22 : vector<32x32xf32>
      %24 = arith.mulf %18, %23 : vector<32x32xf32>
      %25 = arith.truncf %24 : vector<32x32xf32> to vector<32x32xbf16>
      %c0_17 = arith.constant 0 : index
      %c0_18 = arith.constant 0 : index
      %26 = vector.load %arg6[%c0_17, %c0_18] : memref<32x32xbf16, #tpu.memory_space<vmem>>, vector<32x32xbf16>
      tpu.vector_store %arg6[%c0_17, %c0_18], %25 {strides = array<i32>} : memref<32x32xbf16, #tpu.memory_space<vmem>>, vector<32x32xbf16>,
    } else {
    }
    return
  }
  func.func @transform_0(%arg0: i32, %arg1: i32) -> (i32, i32) {
    %c0_i32 = arith.constant 0 : i32
    return %arg0, %arg1 : i32, i32
  }
  func.func @transform_1(%arg0: i32, %arg1: i32) -> (i32, i32) {
    %c0_i32 = arith.constant 0 : i32
    %c0_i32_0 = arith.constant 0 : i32
    return %arg1, %c0_i32 : i32, i32
  }
  func.func @transform_2(%arg0: i32, %arg1: i32) -> (i32, i32) {
    %c0_i32 = arith.constant 0 : i32
    %c0_i32_0 = arith.constant 0 : i32
    %c0_i32_1 = arith.constant 0 : i32
    return %c0_i32, %c0_i32_0 : i32, i32
  }
  func.func @transform_3(%arg0: i32, %arg1: i32) -> (i32, i32) {
    %c0_i32 = arith.constant 0 : i32
    %c0_i32_0 = arith.constant 0 : i32
    %c0_i32_1 = arith.constant 0 : i32
    return %c0_i32, %c0_i32_0 : i32, i32
  }
  func.func @transform_4(%arg0: i32, %arg1: i32) -> (i32, i32) {
    %c0_i32 = arith.constant 0 : i32
    %c0_i32_0 = arith.constant 0 : i32
    return %arg0, %c0_i32 : i32, i32
  }
}

</mosaic_0001>

<llo_original>
// kernel: tpu_custom_call.1
$region0: #{tpu_custom_call.1}
  #allocation0 [shape = 'u32[]', space=smem, size = 0x4, offset = 0x4, fixed_abs, tag = 'smem constant byte address 0x4 - core index']
  #allocation1 [shape = 'u32[72,128]{1,0:T(1,128)}', space=vmem, size = 0x9000, scoped, tag = 'internal scratch']
  #allocation2 [shape = 'f32[32,32]{1,0:T(8,128)}', space=vmem, size = 0x4000, scoped, tag = 'scratch operand']
  %s0 = inlined_call_operand.vmem [shape: bf16[32,64], index: 0, kind: input, shape index: {}]
  %s1 = inlined_call_operand.vmem [shape: bf16[64,32], index: 1, kind: input, shape index: {}]
  %s2 = inlined_call_operand.vmem [shape: f32[1,32], index: 2, kind: input, shape index: {}]
  %s3 = inlined_call_operand.vmem [shape: f32[1,32], index: 3, kind: input, shape index: {}]
  %s4 = inlined_call_operand.hbm [shape: bf16[32,32], index: 4, kind: output, shape index: {}]
  %s5 = sld [smem:[#allocation0]]
  $region34: #{tpu_custom_call.1} parent=0
    _
  %s7 = ssub.s32 1, %s5
  %s8 = scalar_select 0, %s7, %s5
  $region1: #{tpu_custom_call.1} parent=0
    #allocation3 [shape = 'u8[8192]{0}', space=vmem, size = 0x2000, scoped, tag = 'output window, operand 0, single buffered']
    #allocation4 [shape = 's32[1]{0}', space=sflag, size = 0x4, scoped, tag = 'scoped memory for tpu_custom_call.1']
    %9 = vsyncpa [#allocation4], 0
    // Predicated region
    $region2: #{tpu_custom_call.1} parent=1 // pred_check
      _
    $region3: #{tpu_custom_call.1} parent=1 // pred_check_branch
      %11 = sbr.rel (0) target = $region5
    $region4: #{tpu_custom_call.1} parent=1 // pred_region
      _
    $region5: #{tpu_custom_call.1} parent=1 // pred_fallthru
      _
    // Predicated region
    $region6: #{tpu_custom_call.1} parent=1 // pred_check
      _
    $region7: #{tpu_custom_call.1} parent=1 // pred_check_branch
      %13 = sbr.rel (0) target = $region9
    $region8: #{tpu_custom_call.1} parent=1 // pred_region
      _
    $region9: #{tpu_custom_call.1} parent=1 // pred_fallthru
      _
    // Predicated region
    $region10: #{tpu_custom_call.1} parent=1 // pred_check
      _
    $region11: #{tpu_custom_call.1} parent=1 // pred_check_branch
      %15 = sbr.rel (0) target = $region13
    $region12: #{tpu_custom_call.1} parent=1 // pred_region
      _
    $region13: #{tpu_custom_call.1} parent=1 // pred_fallthru
      _
    // Predicated region
    $region14: #{tpu_custom_call.1} parent=1 // pred_check
      _
    $region15: #{tpu_custom_call.1} parent=1 // pred_check_branch
      %17 = sbr.rel (0) target = $region17
    $region16: #{tpu_custom_call.1} parent=1 // pred_region
      _
    $region17: #{tpu_custom_call.1} parent=1 // pred_fallthru
      _
    %p19 = scmp.eq.s32.totalorder 0, 0
    // Predicated region
    $region18: #{tpu_custom_call.1} parent=1 // pred_check
      %p20 = pneg %p19
    $region19: #{tpu_custom_call.1} parent=1 // pred_check_branch
      %22 = sbr.rel (%p20) target = $region21
    $region20: #{tpu_custom_call.1} parent=1 // pred_region
      %vm23 = vcmask 261120
      %24 = vst.msk [vmem:[#allocation2] sm:$0xff] %vm23, 0.0
      %25 = vst.msk [vmem:[#allocation2 + $0x8] sm:$0xff] %vm23, 0.0
      %26 = vst.msk [vmem:[#allocation2 + $0x10] sm:$0xff] %vm23, 0.0
      %27 = vst.msk [vmem:[#allocation2 + $0x18] sm:$0xff] %vm23, 0.0
    $region21: #{tpu_custom_call.1} parent=1 // pred_fallthru
      _
    %v28 = vld [vmem:[#allocation2] sm:$0xff]
    %v29 = vld [vmem:[#allocation2 + $0x8] sm:$0xff]
    %v30 = vld [vmem:[#allocation2 + $0x10] sm:$0xff]
    %v31 = vld [vmem:[#allocation2 + $0x18] sm:$0xff]
    %v32 = vld [vmem:[%s0] sm:$0xf]
    %v33 = vld [vmem:[%s0 + $0x4] sm:$0xf]
    %v34 = vld [vmem:[%s0 + $0x8] sm:$0xf]
    %v35 = vld [vmem:[%s0 + $0xc] sm:$0xf]
    %v36 = vld [vmem:[%s1] sm:$0xf]
    %v37 = vld [vmem:[%s1 + $0x4] sm:$0xf]
    %v38 = vld [vmem:[%s1 + $0x8] sm:$0xf]
    %v39 = vld [vmem:[%s1 + $0xc] sm:$0xf]
    %v40 = vld [vmem:[%s1 + $0x10] sm:$0xf]
    %v41 = vld [vmem:[%s1 + $0x14] sm:$0xf]
    %v42 = vld [vmem:[%s1 + $0x18] sm:$0xf]
    %v43 = vld [vmem:[%s1 + $0x1c] sm:$0xf]
    %v48 = vunpack.c.l.b16 %v32
    %v49 = vunpack.c.l.b16 %v33
    %v50 = vunpack.c.l.b16 %v34
    %v51 = vunpack.c.l.b16 %v35
    %v52 = vpack.c.b16 %v49, %v48
    %v53 = vpack.c.b16 %v51, %v50
    %v62 = vunpack.c.l.b16 %v36
    %v63 = vunpack.c.l.b16 %v37
    %v64 = vunpack.c.l.b16 %v38
    %v65 = vunpack.c.l.b16 %v39
    %v66 = vunpack.c.l.b16 %v40
    %v67 = vunpack.c.l.b16 %v41
    %v68 = vunpack.c.l.b16 %v42
    %v69 = vunpack.c.l.b16 %v43
    %v70 = vpack.c.b16 %v63, %v62
    %v71 = vpack.c.b16 %v65, %v64
    %v72 = vpack.c.b16 %v67, %v66
    %v73 = vpack.c.b16 %v69, %v68
    %vm78 = vcmask 523264
    %v80 = vsel %vm78, %v52, 0
    %v83 = vsel %vm78, %v53, 0
    %85 = vmatpush.bf16.msra.mxu0 0
    %86 = vmatpush.bf16.msra.mxu0 0
    %87 = vmatpush.bf16.msra.mxu0 0
    %88 = vmatpush.bf16.msra.mxu0 0
    %89 = vmatpush.bf16.msra.mxu0 %v73
    %90 = vmatpush.bf16.msra.mxu0 %v72
    %91 = vmatpush.bf16.msra.mxu0 %v71
    %92 = vmatpush.bf16.msra.mxu0 %v70
    %93 = vmatmul.bf16.gmra.mxu0 %v80
    %v94 = vpop.f32.mrf.mxu0
    %v95 = vadd.f32 0.0, %v94
    %v96 = vpop.f32.mrf.mxu0
    %v97 = vadd.f32 0.0, %v96
    %98 = vmatmul.bf16.gmra.mxu0 %v83
    %v99 = vpop.f32.mrf.mxu0
    %v100 = vadd.f32 0.0, %v99
    %v101 = vpop.f32.mrf.mxu0
    %v102 = vadd.f32 0.0, %v101
    %103 = vdwg.mxu0
    %v104 = vadd.f32 %v28, %v95
    %v105 = vadd.f32 %v29, %v97
    %v106 = vadd.f32 %v30, %v100
    %v107 = vadd.f32 %v31, %v102
    %vm108 = vcmask 261120
    %109 = vst.msk [vmem:[#allocation2] sm:$0xff] %vm108, %v104
    %110 = vst.msk [vmem:[#allocation2 + $0x8] sm:$0xff] %vm108, %v105
    %111 = vst.msk [vmem:[#allocation2 + $0x10] sm:$0xff] %vm108, %v106
    %112 = vst.msk [vmem:[#allocation2 + $0x18] sm:$0xff] %vm108, %v107
    // Predicated region
    $region22: #{tpu_custom_call.1} parent=1 // pred_check
      %p113 = pneg %p19
    $region23: #{tpu_custom_call.1} parent=1 // pred_check_branch
      %115 = sbr.rel (%p113) target = $region25
    $region24: #{tpu_custom_call.1} parent=1 // pred_region
      %v116 = vld [vmem:[#allocation2] sm:$0xff]
      %v117 = vld [vmem:[#allocation2 + $0x8] sm:$0xff]
      %v118 = vld [vmem:[#allocation2 + $0x10] sm:$0xff]
      %v119 = vld [vmem:[#allocation2 + $0x18] sm:$0xff]
      %v120 = vld [vmem:[%s2] sm:$0x1]
      %v122 = vperm.slane %v120, 0
      %v124 = vmul.f32 %v116, %v122
      %v125 = vmul.f32 %v117, %v122
      %v126 = vmul.f32 %v118, %v122
      %v127 = vmul.f32 %v119, %v122
      %v128 = vld [vmem:[%s3] sm:$0x1]
      %v130 = vperm.slane %v128, 0
      %v132 = vadd.f32 %v124, %v130
      %v133 = vadd.f32 %v125, %v130
      %v134 = vadd.f32 %v126, %v130
      %v135 = vadd.f32 %v127, %v130
      %v136 = vxor.u32 %v132, 2147483648
      %v137 = vxor.u32 %v133, 2147483648
      %v138 = vxor.u32 %v134, 2147483648
      %v139 = vxor.u32 %v135, 2147483648
      %v140 = vmul.f32 %v136, 1.442695
      %v141 = vpow.pop %v140
      %v142 = vmul.f32 %v137, 1.442695
      %v143 = vpow.pop %v142
      %v144 = vmul.f32 %v138, 1.442695
      %v145 = vpow.pop %v144
      %v146 = vmul.f32 %v139, 1.442695
      %v147 = vpow.pop %v146
      %v148 = vadd.f32 %v141, 1.0
      %v149 = vadd.f32 %v143, 1.0
      %v150 = vadd.f32 %v145, 1.0
      %v151 = vadd.f32 %v147, 1.0
      %v152 = vrcp.pop %v148
      %v153 = vmul.f32 %v148, %v152
      %v154 = vsub.f32 1.0, %v153
      %v155 = vmul.f32 %v152, %v154
      %v156 = vadd.f32 %v152, %v155
      %vm157 = vweird.f32 %v148
      %vm158 = vweird.f32 %v152
      %vm159 = vmor %vm157, %vm158
      %v160 = vsel %vm159, %v152, %v156
      %v161 = vand.u32 2147483647, %v148
      %vm162 = vcmp.eq.f32.partialorder %v161, 8.507059e+37
      %v163 = vand.u32 %v148, 2147483648
      %v164 = vor.u32 1.1754944e-38, %v163
      %v165 = vsel %vm162, %v164, %v160
      %v166 = vmul.f32 1.0, %v165
      %v167 = vrcp.pop %v149
      %v168 = vmul.f32 %v149, %v167
      %v169 = vsub.f32 1.0, %v168
      %v170 = vmul.f32 %v167, %v169
      %v171 = vadd.f32 %v167, %v170
      %vm172 = vweird.f32 %v149
      %vm173 = vweird.f32 %v167
      %vm174 = vmor %vm172, %vm173
      %v175 = vsel %vm174, %v167, %v171
      %v176 = vand.u32 2147483647, %v149
      %vm177 = vcmp.eq.f32.partialorder %v176, 8.507059e+37
      %v178 = vand.u32 %v149, 2147483648
      %v179 = vor.u32 1.1754944e-38, %v178
      %v180 = vsel %vm177, %v179, %v175
      %v181 = vmul.f32 1.0, %v180
      %v182 = vrcp.pop %v150
      %v183 = vmul.f32 %v150, %v182
      %v184 = vsub.f32 1.0, %v183
      %v185 = vmul.f32 %v182, %v184
      %v186 = vadd.f32 %v182, %v185
      %vm187 = vweird.f32 %v150
      %vm188 = vweird.f32 %v182
      %vm189 = vmor %vm187, %vm188
      %v190 = vsel %vm189, %v182, %v186
      %v191 = vand.u32 2147483647, %v150
      %vm192 = vcmp.eq.f32.partialorder %v191, 8.507059e+37
      %v193 = vand.u32 %v150, 2147483648
      %v194 = vor.u32 1.1754944e-38, %v193
      %v195 = vsel %vm192, %v194, %v190
      %v196 = vmul.f32 1.0, %v195
      %v197 = vrcp.pop %v151
      %v198 = vmul.f32 %v151, %v197
      %v199 = vsub.f32 1.0, %v198
      %v200 = vmul.f32 %v197, %v199
      %v201 = vadd.f32 %v197, %v200
      %vm202 = vweird.f32 %v151
      %vm203 = vweird.f32 %v197
      %vm204 = vmor %vm202, %vm203
      %v205 = vsel %vm204, %v197, %v201
      %v206 = vand.u32 2147483647, %v151
      %vm207 = vcmp.eq.f32.partialorder %v206, 8.507059e+37
      %v208 = vand.u32 %v151, 2147483648
      %v209 = vor.u32 1.1754944e-38, %v208
      %v210 = vsel %vm207, %v209, %v205
      %v211 = vmul.f32 1.0, %v210
      %v212 = vmul.f32 %v132, %v166
      %v213 = vmul.f32 %v133, %v181
      %v214 = vmul.f32 %v134, %v196
      %v215 = vmul.f32 %v135, %v211
      %v216 = vpack.c.bf16 %v212, %v212
      %v217 = vpack.c.bf16 %v213, %v213
      %v218 = vpack.c.bf16 %v214, %v214
      %v219 = vpack.c.bf16 %v215, %v215
      %vm220 = vcmask 257024
      %221 = vst.msk [vmem:[#allocation3] sm:$0xf] %vm220, %v216
      %222 = vst.msk [vmem:[#allocation3 + $0x4] sm:$0xf] %vm220, %v217
      %223 = vst.msk [vmem:[#allocation3 + $0x8] sm:$0xf] %vm220, %v218
      %224 = vst.msk [vmem:[#allocation3 + $0xc] sm:$0xf] %vm220, %v219
    $region25: #{tpu_custom_call.1} parent=1 // pred_fallthru
      _
    // Predicated region
    $region26: #{tpu_custom_call.1} parent=1 // pred_check
      _
    $region27: #{tpu_custom_call.1} parent=1 // pred_check_branch
      %226 = sbr.rel (0) target = $region29
    $region28: #{tpu_custom_call.1} parent=1 // pred_region
      %228 = vsyncadd [#allocation4], 0
      %s229 = sshll.u32 [#allocation3], 4
      %s230 = int_to_ptr.vmem [resolvable:$true] %s229
      %s231 = sshll.u32 %s4, 4
      %s232 = int_to_ptr.hbm [resolvable:$true] %s231
      %237 = dma.vmem_to_hbm [thread:$0]  %s230, 256, %s232, [#allocation4], 64, 64, 4
    $region29: #{tpu_custom_call.1} parent=1 // pred_fallthru
      _
    // Predicated region
    $region30: #{tpu_custom_call.1} parent=1 // pred_check
      _
    $region31: #{tpu_custom_call.1} parent=1 // pred_check_branch
      %239 = sbr.rel (0) target = $region33
    $region32: #{tpu_custom_call.1} parent=1 // pred_region
      %241 = dma.done [#allocation4], 256
    $region33: #{tpu_custom_call.1} parent=1 // pred_fallthru
      _
    %242 = vsyncpa [#allocation4], 1

</llo_original>
